<compile_context>
chip_gen: v5e
topology: v5e:2x2
jax: 0.10.0
libtpu: 0.0.40
codegen_flags: <defaults>
</compile_context>

<pallas_src>
import functools

import jax
import jax.numpy as jnp
from jax.experimental import pallas as pl
from jax.experimental.pallas import tpu as pltpu


def _hinge_kernel(pred_ref, targ_ref, val_ref, idx_ref, *, inv_n):
    """One (TN, TD) tile: elementwise hot path + running max/argmax update."""
    k = pl.program_id(1)                   # N (reduction) tile index
    n_tiles = pl.num_programs(1)
    tn = pred_ref.shape[0]

    # Elementwise on the VPU, tile-local sublane reduce on the XLU.
    e = jnp.abs(0.5 - pred_ref[...] * targ_ref[...])             # (TN, TD)
    tile_max = jnp.max(e, axis=0, keepdims=True)                  # (1, TD)

    # First tile-local row achieving the max (matches jnp.argmax / torch.max
    # first-occurrence tie-breaking), offset to a global N index.
    # NOTE: an all-NaN column would yield an out-of-range index; not reachable
    # with finite inputs.
    ids = jax.lax.broadcasted_iota(jnp.int32, e.shape, 0)         # (TN, TD)
    tile_idx = (
        jnp.min(jnp.where(e == tile_max, ids, jnp.int32(tn)), axis=0, keepdims=True)
        + k * tn
    ).astype(jnp.int32)                                           # (1, TD)

    @pl.when(k == 0)
    def _init():
        val_ref[...] = tile_max
        idx_ref[...] = tile_idx

    @pl.when(k > 0)
    def _update():
        # Strict '>' keeps the earlier (smaller N) index on ties -> first occurrence.
        better = tile_max > val_ref[...]
        val_ref[...] = jnp.where(better, tile_max, val_ref[...])
        idx_ref[...] = jnp.where(better, tile_idx, idx_ref[...])

    @pl.when(k == n_tiles - 1)
    def _finalize():
        # Apply the 1/N scale exactly once, in f32, then cast back (bf16-safe).
        scaled = val_ref[...].astype(jnp.float32) * jnp.float32(inv_n)
        val_ref[...] = scaled.astype(val_ref.dtype)


def _round_up(x, m):
    return (x + m - 1) // m * m


def _sublane_align(dtype):
    # Sub-32-bit dtypes pack along sublanes: 8 for 4B, 16 for 2B, 32 for 1B.
    return {4: 8, 2: 16, 1: 32}.get(jnp.dtype(dtype).itemsize, 8)


def _vmem_cap_bytes():
    try:
        cap = int(pltpu.get_tpu_info().vmem_capacity_bytes)
    except Exception:
        cap = 64 << 20                      # conservative (v7x physical VMEM)
    # Leave 1/4 of physical VMEM for Mosaic internal scratch / other users.
    return max(int(cap * 3 // 4), 16 << 20)


def hinge_loss(y_pred, y_target, *, tn=None, feature_tiles=1, tile_bytes=2 << 20):
    assert y_pred.shape == y_target.shape and y_pred.ndim == 2
    assert y_pred.dtype == y_target.dtype
    N, D = y_pred.shape
    dtype = y_pred.dtype
    itemsize = jnp.dtype(dtype).itemsize
    align = _sublane_align(dtype)
    inv_n = 1.0 / float(N)                  # scale always uses the original N

    # ---- feature (lane) tiling: prefer the full row for contiguous DMAs ----
    if feature_tiles > 1 and D % (feature_tiles * 128) == 0:
        td = D // feature_tiles             # opt-in split for megacore (v7x)
    else:
        td = D                              # one contiguous tn*D DMA per step
    nd = D // td

    # ---- reduction (sublane) tiling: bounded by streaming target & VMEM ----
    cap = _vmem_cap_bytes()
    out_bytes = 2 * 2 * td * (itemsize + 4)          # double-buffered outputs
    tile_budget = max(cap - out_bytes - (2 << 20), td * (4 * itemsize + 16))
    per_row = td * (4 * itemsize + 16)               # 2in x 2buf + ~4 f32 temps
    tn_cap = min(tile_budget // per_row,             # fits the VMEM budget
                 max(tile_bytes // (td * itemsize), align),  # ~2 MiB / input / step
                 2048)
    tn_cap = max(align, (tn_cap // align) * align)

    n_pad = _round_up(N, align)
    if tn is None:
        tn = min(tn_cap, n_pad)
        t = (tn // align) * align
        while t > align and n_pad % t != 0:          # largest aligned divisor
            t -= align
        tn = max(t, align)
    assert tn % align == 0

    # Pad N so the reduction axis is an exact multiple of tn.  Padded rows use
    # pred=1.0, targ=0.5 -> e = |0.5 - 0.5| = 0, which never wins the max (all
    # real e >= 0 and ties resolve to the smaller, i.e. real, index).
    n_pad = _round_up(N, tn)
    pad = n_pad - N
    if pad:
        y_pred = jnp.pad(y_pred, ((0, pad), (0, 0)), constant_values=1.0)
        y_target = jnp.pad(y_target, ((0, pad), (0, 0)), constant_values=0.5)

    grid = (nd, n_pad // tn)                # feature tiles (parallel), N tiles (arbitrary)

    # 2 inputs x 2 pipeline buffers + full-tile f32 temporaries + outputs + headroom.
    vmem_bytes = (2 * 2 * tn * td * itemsize
                  + 4 * tn * td * 4
                  + out_bytes
                  + (2 << 20))
    vmem_bytes = int(min(max(vmem_bytes, 8 << 20), cap))

    kernel = functools.partial(_hinge_kernel, inv_n=inv_n)
    vals, idxs = pl.pallas_call(
        kernel,
        out_shape=(
            jax.ShapeDtypeStruct((1, D), dtype),
            jax.ShapeDtypeStruct((1, D), jnp.int32),
        ),
        grid=grid,
        in_specs=[
            pl.BlockSpec((tn, td), lambda j, k: (k, j)),
            pl.BlockSpec((tn, td), lambda j, k: (k, j)),
        ],
        out_specs=(
            pl.BlockSpec((1, td), lambda j, k: (0, j)),   # resident across k
            pl.BlockSpec((1, td), lambda j, k: (0, j)),   # resident across k
        ),
        compiler_params=pltpu.CompilerParams(
            dimension_semantics=("parallel", "arbitrary"),
            vmem_limit_bytes=vmem_bytes,
        ),
    )(y_pred, y_target)

    # Squeeze to torch's reduced shape (D,).
    return vals[0], idxs[0]


if __name__ == "__main__":
    key = jax.random.PRNGKey(0)
    k1, k2, k3, k4 = jax.random.split(key, 4)

    N, D = 32, 256
    y_pred = jax.random.normal(k1, (N, D), dtype=jnp.float32)
    y_target = jax.random.normal(k2, (N, D), dtype=jnp.float32)

    e_ref = jnp.abs(0.5 - y_pred * y_target)
    ref_vals = jnp.max(e_ref, axis=0) / N
    ref_idx = jnp.argmax(e_ref, axis=0).astype(jnp.int32)

    # Case 1: forced multi-tile grid (2 feature tiles x 4 reduction tiles) so the
    # resident-output running max/argmax accumulator path is exercised.
    values, indices = hinge_loss(y_pred, y_target, tn=8, feature_tiles=2)
    jax.block_until_ready((values, indices))
    assert jnp.allclose(values, ref_vals, atol=1e-6, rtol=1e-6)
    assert jnp.array_equal(indices, ref_idx)

    # Case 2: default auto tiling (full-row td -> single contiguous DMA per step).
    v2, i2 = hinge_loss(y_pred, y_target)
    jax.block_until_ready((v2, i2))
    assert jnp.allclose(v2, ref_vals, atol=1e-6, rtol=1e-6)
    assert jnp.array_equal(i2, ref_idx)

    # Case 3: non-divisible N -> exercises the zero-contribution padding path.
    N3 = 37
    y_pred3 = jax.random.normal(k3, (N3, D), dtype=jnp.float32)
    y_target3 = jax.random.normal(k4, (N3, D), dtype=jnp.float32)
    v3, i3 = hinge_loss(y_pred3, y_target3)
    jax.block_until_ready((v3, i3))
    e3 = jnp.abs(0.5 - y_pred3 * y_target3)
    assert jnp.allclose(v3, jnp.max(e3, axis=0) / N3, atol=1e-6, rtol=1e-6)
    assert jnp.array_equal(i3, jnp.argmax(e3, axis=0).astype(jnp.int32))

    # Case 4: bf16 inputs -> 16-sublane alignment + f32-scaled finalize cast back.
    yp_b = y_pred.astype(jnp.bfloat16)
    yt_b = y_target.astype(jnp.bfloat16)
    v4, i4 = hinge_loss(yp_b, yt_b)
    jax.block_until_ready((v4, i4))
    assert v4.dtype == jnp.bfloat16 and i4.dtype == jnp.int32
    assert jnp.all((i4 >= 0) & (i4 < N))
    e_b = jnp.abs(0.5 - yp_b.astype(jnp.float32) * yt_b.astype(jnp.float32))
    assert jnp.allclose(v4.astype(jnp.float32), jnp.max(e_b, axis=0) / N,
                        atol=2e-2, rtol=2e-2)
    gathered = e_b[i4, jnp.arange(D)]
    assert jnp.all(gathered >= jnp.max(e_b, axis=0) * (1.0 - 2e-2) - 1e-3)

    print("KERNEL_OK")
</pallas_src>

<mosaic_0001>
module attributes {stable_mosaic.version = 11 : i64} {
  func.func @_hinge_kernel(%arg0: i32, %arg1: i32, %arg2: memref<8x128xf32, #tpu.memory_space<vmem>>, %arg3: memref<8x128xf32, #tpu.memory_space<vmem>>, %arg4: memref<1x128xf32, #tpu.memory_space<vmem>>, %arg5: memref<1x128xi32, #tpu.memory_space<vmem>>) attributes {dimension_semantics = [#tpu.dimension_semantics<parallel>, #tpu.dimension_semantics<arbitrary>], iteration_bounds = array<i64: 2, 4>, scalar_prefetch = 0 : i64, scratch_operands = 0 : i64, tpu.core_type = #tpu.core_type<tc>, window_params = [{transform_indices = @transform_0, window_bounds = array<i64: 8, 128>}, {transform_indices = @transform_1, window_bounds = array<i64: 8, 128>}, {transform_indices = @transform_2, window_bounds = array<i64: 1, 128>}, {transform_indices = @transform_3, window_bounds = array<i64: 1, 128>}]} {
    %c0 = arith.constant 0 : index
    %c0_0 = arith.constant 0 : index
    %0 = vector.load %arg2[%c0, %c0_0] : memref<8x128xf32, #tpu.memory_space<vmem>>, vector<8x128xf32>
    %c0_1 = arith.constant 0 : index
    %c0_2 = arith.constant 0 : index
    %1 = vector.load %arg3[%c0_1, %c0_2] : memref<8x128xf32, #tpu.memory_space<vmem>>, vector<8x128xf32>
    %2 = arith.mulf %0, %1 : vector<8x128xf32>
    %cst = arith.constant 5.000000e-01 : f32
    %3 = vector.broadcast %cst : f32 to vector<8x128xf32>
    %4 = arith.subf %3, %2 : vector<8x128xf32>
    %5 = math.absf %4 : vector<8x128xf32>
    %cst_3 = arith.constant dense<0xFF800000> : vector<128xf32>
    %6 = vector.multi_reduction <maximumf>, %5, %cst_3 [0] : vector<8x128xf32> to vector<128xf32>
    %7 = vector.shape_cast %6 : vector<128xf32> to vector<1x128xf32>
    %8 = tpu.iota {dimensions = array<i32: 0>} : vector<8x128xi32>
    %9 = vector.broadcast %7 : vector<1x128xf32> to vector<8x128xf32>
    %10 = arith.cmpf oeq, %5, %9 : vector<8x128xf32>
    %c8_i32 = arith.constant 8 : i32
    %11 = vector.broadcast %c8_i32 : i32 to vector<8x128xi32>
    %12 = arith.select %10, %8, %11 : vector<8x128xi1>, vector<8x128xi32>
    %cst_4 = arith.constant dense<2147483647> : vector<128xi32>
    %13 = vector.multi_reduction <minsi>, %12, %cst_4 [0] : vector<8x128xi32> to vector<128xi32>
    %14 = vector.shape_cast %13 : vector<128xi32> to vector<1x128xi32>
    %c8_i32_5 = arith.constant 8 : i32
    %15 = arith.muli %arg1, %c8_i32_5 : i32
    %16 = vector.broadcast %15 : i32 to vector<1x128xi32>
    %17 = arith.addi %14, %16 : vector<1x128xi32>
    %c0_i32 = arith.constant 0 : i32
    %18 = arith.cmpi eq, %arg1, %c0_i32 : i32
    %19 = arith.extui %18 : i1 to i32
    %c0_i32_6 = arith.constant 0 : i32
    %20 = arith.cmpi ne, %19, %c0_i32_6 : i32
    scf.if %20 {
      %c0_10 = arith.constant 0 : index
      %c0_11 = arith.constant 0 : index
      %27 = vector.load %arg4[%c0_10, %c0_11] : memref<1x128xf32, #tpu.memory_space<vmem>>, vector<1x128xf32>
      tpu.vector_store %arg4[%c0_10, %c0_11], %7 {strides = array<i32>} : memref<1x128xf32, #tpu.memory_space<vmem>>, vector<1x128xf32>,
      %c0_12 = arith.constant 0 : index
      %c0_13 = arith.constant 0 : index
      %28 = vector.load %arg5[%c0_12, %c0_13] : memref<1x128xi32, #tpu.memory_space<vmem>>, vector<1x128xi32>
      tpu.vector_store %arg5[%c0_12, %c0_13], %17 {strides = array<i32>} : memref<1x128xi32, #tpu.memory_space<vmem>>, vector<1x128xi32>,
    } else {
    }
    %c0_i32_7 = arith.constant 0 : i32
    %21 = arith.cmpi sgt, %arg1, %c0_i32_7 : i32
    %22 = arith.extui %21 : i1 to i32
    %c0_i32_8 = arith.constant 0 : i32
    %23 = arith.cmpi ne, %22, %c0_i32_8 : i32
    scf.if %23 {
      %c0_10 = arith.constant 0 : index
      %c0_11 = arith.constant 0 : index
      %27 = vector.load %arg4[%c0_10, %c0_11] : memref<1x128xf32, #tpu.memory_space<vmem>>, vector<1x128xf32>
      %28 = arith.cmpf ogt, %7, %27 : vector<1x128xf32>
      %c0_12 = arith.constant 0 : index
      %c0_13 = arith.constant 0 : index
      %29 = vector.load %arg4[%c0_12, %c0_13] : memref<1x128xf32, #tpu.memory_space<vmem>>, vector<1x128xf32>
      %30 = arith.select %28, %7, %29 : vector<1x128xi1>, vector<1x128xf32>
      %c0_14 = arith.constant 0 : index
      %c0_15 = arith.constant 0 : index
      %31 = vector.load %arg4[%c0_14, %c0_15] : memref<1x128xf32, #tpu.memory_space<vmem>>, vector<1x128xf32>
      tpu.vector_store %arg4[%c0_14, %c0_15], %30 {strides = array<i32>} : memref<1x128xf32, #tpu.memory_space<vmem>>, vector<1x128xf32>,
      %c0_16 = arith.constant 0 : index
      %c0_17 = arith.constant 0 : index
      %32 = vector.load %arg5[%c0_16, %c0_17] : memref<1x128xi32, #tpu.memory_space<vmem>>, vector<1x128xi32>
      %33 = arith.select %28, %17, %32 : vector<1x128xi1>, vector<1x128xi32>
      %c0_18 = arith.constant 0 : index
      %c0_19 = arith.constant 0 : index
      %34 = vector.load %arg5[%c0_18, %c0_19] : memref<1x128xi32, #tpu.memory_space<vmem>>, vector<1x128xi32>
      tpu.vector_store %arg5[%c0_18, %c0_19], %33 {strides = array<i32>} : memref<1x128xi32, #tpu.memory_space<vmem>>, vector<1x128xi32>,
    } else {
    }
    %c3_i32 = arith.constant 3 : i32
    %24 = arith.cmpi eq, %arg1, %c3_i32 : i32
    %25 = arith.extui %24 : i1 to i32
    %c0_i32_9 = arith.constant 0 : i32
    %26 = arith.cmpi ne, %25, %c0_i32_9 : i32
    scf.if %26 {
      %c0_10 = arith.constant 0 : index
      %c0_11 = arith.constant 0 : index
      %27 = vector.load %arg4[%c0_10, %c0_11] : memref<1x128xf32, #tpu.memory_space<vmem>>, vector<1x128xf32>
      %cst_12 = arith.constant 3.125000e-02 : f32
      %28 = vector.broadcast %cst_12 : f32 to vector<1x128xf32>
      %29 = arith.mulf %27, %28 : vector<1x128xf32>
      %c0_13 = arith.constant 0 : index
      %c0_14 = arith.constant 0 : index
      %30 = vector.load %arg4[%c0_13, %c0_14] : memref<1x128xf32, #tpu.memory_space<vmem>>, vector<1x128xf32>
      tpu.vector_store %arg4[%c0_13, %c0_14], %29 {strides = array<i32>} : memref<1x128xf32, #tpu.memory_space<vmem>>, vector<1x128xf32>,
    } else {
    }
    return
  }
  func.func @transform_0(%arg0: i32, %arg1: i32) -> (i32, i32) {
    %c0_i32 = arith.constant 0 : i32
    return %arg1, %arg0 : i32, i32
  }
  func.func @transform_1(%arg0: i32, %arg1: i32) -> (i32, i32) {
    %c0_i32 = arith.constant 0 : i32
    return %arg1, %arg0 : i32, i32
  }
  func.func @transform_2(%arg0: i32, %arg1: i32) -> (i32, i32) {
    %c0_i32 = arith.constant 0 : i32
    %c0_i32_0 = arith.constant 0 : i32
    return %c0_i32, %arg0 : i32, i32
  }
  func.func @transform_3(%arg0: i32, %arg1: i32) -> (i32, i32) {
    %c0_i32 = arith.constant 0 : i32
    %c0_i32_0 = arith.constant 0 : i32
    return %c0_i32, %arg0 : i32, i32
  }
}

</mosaic_0001>

<llo_original>
// kernel: tpu_custom_call.1
$region0: #{tpu_custom_call.1}
  #allocation0 [shape = 'u32[]', space=smem, size = 0x4, offset = 0x4, fixed_abs, tag = 'smem constant byte address 0x4 - core index']
  #allocation1 [shape = 'u32[72,128]{1,0:T(1,128)}', space=vmem, size = 0x9000, scoped, tag = 'internal scratch']
  %s0 = inlined_call_operand.hbm [shape: f32[32,256], index: 0, kind: input, shape index: {}]
  %s1 = inlined_call_operand.hbm [shape: f32[32,256], index: 1, kind: input, shape index: {}]
  %s2 = inlined_call_operand.hbm [shape: f32[1,256], index: 2, kind: output, shape index: {0}]
  %s3 = inlined_call_operand.hbm [shape: s32[1,256], index: 3, kind: output, shape index: {1}]
  %4 = xla_tuple %s2, %s3
  %s5 = sld [smem:[#allocation0]]
  $region69: #{tpu_custom_call.1} parent=0
    _
  %s7 = ssub.s32 1, %s5
  %s8 = scalar_select 0, %s7, %s5
  $region1: #{tpu_custom_call.1} parent=0
    #allocation2 [shape = 'u8[8192]{0}', space=vmem, size = 0x2000, scoped, tag = 'input window, operand 0']
    #allocation3 [shape = 's32[2]{0}', space=sflag, size = 0x8, scoped, tag = 'scoped memory for tpu_custom_call.1']
    #allocation4 [shape = 's32[2]{0}', space=sflag, size = 0x8, scoped, tag = 'scoped memory for tpu_custom_call.1']
    #allocation5 [shape = 'u8[8192]{0}', space=vmem, size = 0x2000, scoped, tag = 'input window, operand 1']
    #allocation6 [shape = 's32[2]{0}', space=sflag, size = 0x8, scoped, tag = 'scoped memory for tpu_custom_call.1']
    #allocation7 [shape = 'u8[1024]{0}', space=vmem, size = 0x400, scoped, tag = 'output window, operand 0']
    #allocation8 [shape = 'u8[1024]{0}', space=vmem, size = 0x400, scoped, tag = 'output window, operand 1']
    #allocation9 [shape = 's32[2]{0}', space=sflag, size = 0x8, scoped, tag = 'scoped memory for tpu_custom_call.1']
    %9 = vsyncpa [#allocation3], 0
    %s10 = scalar_lea.sflag [#allocation3], 1
    %11 = vsyncpa %s10, 0
    %12 = vsyncpa [#allocation6], 0
    %s13 = scalar_lea.sflag [#allocation6], 1
    %14 = vsyncpa %s13, 0
    %15 = vsyncpa [#allocation4], 0
    %s16 = scalar_lea.sflag [#allocation4], 1
    %17 = vsyncpa %s16, 0
    %18 = vsyncpa [#allocation9], 0
    %s19 = scalar_lea.sflag [#allocation9], 1
    %20 = vsyncpa %s19, 0
    loop: start=0, step=1, limit=10
    $region2: #{tpu_custom_call.1} parent=1 // loop_pre_header
      _
    $region3: #{tpu_custom_call.1} parent=1 // loop_header
      %s22 = sphi 0, %s26
      %p23 = scmp.ge.s32.totalorder %s22, 10
      %s29 = sphi 0, %s41
      %s30 = sphi 0, %s37
      %s31 = sphi 0, %s29
      %s32 = sphi 0, %s30
      %s33 = sphi 0, %s31
      %s34 = sphi 0, %s32
      %s46 = sphi 0, %s48
      %s49 = sphi 0, %s46
      %s50 = sphi 0, %s49
      %s66 = sphi 0, %s50
      %s74 = sphi 0, %s76
      %s77 = sphi 0, %s74
      %s78 = sphi 0, %s77
      %s94 = sphi 0, %s78
      %s100 = sphi 0, %s102
      %s103 = sphi 0, %s100
      %s104 = sphi 0, %s103
      %s120 = sphi 0, %s104
      %s126 = sphi 0, %s128
      %s129 = sphi 0, %s126
      %s130 = sphi 0, %s129
      %s146 = sphi 0, %s130
    $region4: #{tpu_custom_call.1} parent=1 // loop_header_branch
      %25 = sbr.rel (%p23) target = $region8
    $region5: #{tpu_custom_call.1} parent=1 // loop_body
      %s27 = ssub.s32 %s22, 1
      %s28 = ssub.s32 %s22, 2
      %s35 = sadd.s32 1, %s30
      %p36 = scmp.ge.s32.totalorder %s35, 4
      %s37 = scalar_select %p36, 0, %s35
      %s38 = sadd.s32 1, %s29
      %s39 = scalar_select %p36, %s38, %s29
      %p40 = scmp.ge.s32.totalorder %s39, 2
      %s41 = scalar_select %p40, 0, %s39
      %s42 = ssub.s32 %s30, %s37
      %s43 = ssub.s32 %s29, %s41
      %s44 = sor.u32 %s42, %s43
      %p45 = scmp.eq.s32.totalorder %s44, 0
      %s47 = sadd.s32 %s46, 1
      %s48 = scalar_select %p45, %s46, %s47
      %p51 = pneg %p45
      %p52 = scmp.eq.s32.totalorder %s22, 7
      %p53 = por %p51, %p52
      %p54 = scmp.ne.s32.totalorder %s46, %s49
      %p55 = scmp.eq.s32.totalorder %s22, 0
      %p56 = por %p54, %p55
      %p57 = scmp.ne.s32.totalorder %s46, %s49
      %p58 = scmp.eq.s32.totalorder %s27, 7
      %p59 = por %p57, %p58
      %p60 = scmp.ne.s32.totalorder %s49, %s50
      %p61 = scmp.eq.s32.totalorder %s27, 0
      %p62 = por %p60, %p61
      %p63 = scmp.ne.s32.totalorder %s49, %s50
      %p64 = scmp.eq.s32.totalorder %s28, 7
      %p65 = por %p63, %p64
      %p67 = scmp.ne.s32.totalorder %s50, %s66
      %p68 = scmp.eq.s32.totalorder %s28, 0
      %p69 = por %p67, %p68
      %s70 = ssub.s32 %s30, %s37
      %s71 = ssub.s32 %s29, %s41
      %s72 = sor.u32 %s70, %s71
      %p73 = scmp.eq.s32.totalorder %s72, 0
      %s75 = sadd.s32 %s74, 1
      %s76 = scalar_select %p73, %s74, %s75
      %p79 = pneg %p73
      %p80 = scmp.eq.s32.totalorder %s22, 7
      %p81 = por %p79, %p80
      %p82 = scmp.ne.s32.totalorder %s74, %s77
      %p83 = scmp.eq.s32.totalorder %s22, 0
      %p84 = por %p82, %p83
      %p85 = scmp.ne.s32.totalorder %s74, %s77
      %p86 = scmp.eq.s32.totalorder %s27, 7
      %p87 = por %p85, %p86
      %p88 = scmp.ne.s32.totalorder %s77, %s78
      %p89 = scmp.eq.s32.totalorder %s27, 0
      %p90 = por %p88, %p89
      %p91 = scmp.ne.s32.totalorder %s77, %s78
      %p92 = scmp.eq.s32.totalorder %s28, 7
      %p93 = por %p91, %p92
      %p95 = scmp.ne.s32.totalorder %s78, %s94
      %p96 = scmp.eq.s32.totalorder %s28, 0
      %p97 = por %p95, %p96
      %s98 = ssub.s32 %s29, %s41
      %p99 = scmp.eq.s32.totalorder %s98, 0
      %s101 = sadd.s32 %s100, 1
      %s102 = scalar_select %p99, %s100, %s101
      %p105 = pneg %p99
      %p106 = scmp.eq.s32.totalorder %s22, 7
      %p107 = por %p105, %p106
      %p108 = scmp.ne.s32.totalorder %s100, %s103
      %p109 = scmp.eq.s32.totalorder %s22, 0
      %p110 = por %p108, %p109
      %p111 = scmp.ne.s32.totalorder %s100, %s103
      %p112 = scmp.eq.s32.totalorder %s27, 7
      %p113 = por %p111, %p112
      %p114 = scmp.ne.s32.totalorder %s103, %s104
      %p115 = scmp.eq.s32.totalorder %s27, 0
      %p116 = por %p114, %p115
      %p117 = scmp.ne.s32.totalorder %s103, %s104
      %p118 = scmp.eq.s32.totalorder %s28, 7
      %p119 = por %p117, %p118
      %p121 = scmp.ne.s32.totalorder %s104, %s120
      %p122 = scmp.eq.s32.totalorder %s28, 0
      %p123 = por %p121, %p122
      %s124 = ssub.s32 %s29, %s41
      %p125 = scmp.eq.s32.totalorder %s124, 0
      %s127 = sadd.s32 %s126, 1
      %s128 = scalar_select %p125, %s126, %s127
      %p131 = pneg %p125
      %p132 = scmp.eq.s32.totalorder %s22, 7
      %p133 = por %p131, %p132
      %p134 = scmp.ne.s32.totalorder %s126, %s129
      %p135 = scmp.eq.s32.totalorder %s22, 0
      %p136 = por %p134, %p135
      %p137 = scmp.ne.s32.totalorder %s126, %s129
      %p138 = scmp.eq.s32.totalorder %s27, 7
      %p139 = por %p137, %p138
      %p140 = scmp.ne.s32.totalorder %s129, %s130
      %p141 = scmp.eq.s32.totalorder %s27, 0
      %p142 = por %p140, %p141
      %p143 = scmp.ne.s32.totalorder %s129, %s130
      %p144 = scmp.eq.s32.totalorder %s28, 7
      %p145 = por %p143, %p144
      %p147 = scmp.ne.s32.totalorder %s130, %s146
      %p148 = scmp.eq.s32.totalorder %s28, 0
      %p149 = por %p147, %p148
      %p150 = scmp.le.s32.totalorder 1, %s22
      %p151 = scmp.lt.s32.totalorder %s22, 9
      %p152 = pnand %p150, %p151
      %p153 = pneg %p152
      // Predicated region
      $region9: #{tpu_custom_call.1} parent=5 // pred_check
        _
      $region10: #{tpu_custom_call.1} parent=5 // pred_check_branch
        %155 = sbr.rel (%p152) target = $region12
      $region11: #{tpu_custom_call.1} parent=5 // pred_region
        %s156 = ssub.s32 %s22, 1
      $region12: #{tpu_custom_call.1} parent=5 // pred_fallthru
        _
      %p157 = scmp.lt.s32.totalorder %s22, 8
      // Predicated region
      $region13: #{tpu_custom_call.1} parent=5 // pred_check
        %p158 = pneg %p157
      $region14: #{tpu_custom_call.1} parent=5 // pred_check_branch
        %160 = sbr.rel (%p158) target = $region16
      $region15: #{tpu_custom_call.1} parent=5 // pred_region
        // Predicated region
        $region17: #{tpu_custom_call.1} parent=15 // pred_check
          %p161 = pneg %p56
        $region18: #{tpu_custom_call.1} parent=15 // pred_check_branch
          %163 = sbr.rel (%p161) target = $region20
        $region19: #{tpu_custom_call.1} parent=15 // pred_region
          %s164 = sand.u32 %s46, 1
          %s165 = scalar_lea.sflag [#allocation3], %s164
          %s166 = sand.u32 %s46, 1
          %s167 = smul.addr %s166, 8
          %s168 = scalar_lea.vmem [#allocation2], %s167
          %170 = vsyncadd %s165, 0
          %s171 = smul.addr %s30, 2
          %s172 = sadd.s32 %s29, %s171
          %s173 = smul.addr %s172, 8
          %s174 = scalar_lea.hbm %s0, %s173
          %s176 = sshll.u32 %s174, 4
          %s177 = int_to_ptr.hbm [resolvable:$true] %s176
          %s178 = sshll.u32 %s168, 4
          %s179 = int_to_ptr.vmem [resolvable:$true] %s178
          %181 = dma.hbm_to_vmem [thread:$0]  %s177, 128, %s179, %s165
        $region20: #{tpu_custom_call.1} parent=15 // pred_fallthru
          _
        // Predicated region
        $region21: #{tpu_custom_call.1} parent=15 // pred_check
          %p182 = pneg %p84
        $region22: #{tpu_custom_call.1} parent=15 // pred_check_branch
          %184 = sbr.rel (%p182) target = $region24
        $region23: #{tpu_custom_call.1} parent=15 // pred_region
          %s185 = sand.u32 %s74, 1
          %s186 = scalar_lea.sflag [#allocation6], %s185
          %s187 = sand.u32 %s74, 1
          %s188 = smul.addr %s187, 8
          %s189 = scalar_lea.vmem [#allocation5], %s188
          %191 = vsyncadd %s186, 0
          %s192 = smul.addr %s30, 2
          %s193 = sadd.s32 %s29, %s192
          %s194 = smul.addr %s193, 8
          %s195 = scalar_lea.hbm %s1, %s194
          %s197 = sshll.u32 %s195, 4
          %s198 = int_to_ptr.hbm [resolvable:$true] %s197
          %s199 = sshll.u32 %s189, 4
          %s200 = int_to_ptr.vmem [resolvable:$true] %s199
          %202 = dma.hbm_to_vmem [thread:$0]  %s198, 128, %s200, %s186
        $region24: #{tpu_custom_call.1} parent=15 // pred_fallthru
          _
      $region16: #{tpu_custom_call.1} parent=5 // pred_fallthru
        _
      %p203 = scmp.le.s32.totalorder 1, %s22
      %p204 = scmp.lt.s32.totalorder %s22, 9
      %p205 = pnand %p203, %p204
      %p206 = pneg %p205
      // Predicated region
      $region25: #{tpu_custom_call.1} parent=5 // pred_check
        _
      $region26: #{tpu_custom_call.1} parent=5 // pred_check_branch
        %208 = sbr.rel (%p205) target = $region28
      $region27: #{tpu_custom_call.1} parent=5 // pred_region
        %s209 = ssub.s32 %s22, 1
        %s210 = sand.u32 %s49, 1
        %s211 = scalar_lea.sflag [#allocation3], %s210
        %s212 = sand.u32 %s49, 1
        %s213 = smul.addr %s212, 8
        %s214 = scalar_lea.vmem [#allocation2], %s213
        // Predicated region
        $region29: #{tpu_custom_call.1} parent=27 // pred_check
          %p215 = pneg %p62
        $region30: #{tpu_custom_call.1} parent=27 // pred_check_branch
          %217 = sbr.rel (%p215) target = $region32
        $region31: #{tpu_custom_call.1} parent=27 // pred_region
          %219 = dma.done %s211, 128
        $region32: #{tpu_custom_call.1} parent=27 // pred_fallthru
          _
        %s220 = sand.u32 %s77, 1
        %s221 = scalar_lea.sflag [#allocation6], %s220
        %s222 = sand.u32 %s77, 1
        %s223 = smul.addr %s222, 8
        %s224 = scalar_lea.vmem [#allocation5], %s223
        // Predicated region
        $region33: #{tpu_custom_call.1} parent=27 // pred_check
          %p225 = pneg %p90
        $region34: #{tpu_custom_call.1} parent=27 // pred_check_branch
          %227 = sbr.rel (%p225) target = $region36
        $region35: #{tpu_custom_call.1} parent=27 // pred_region
          %229 = dma.done %s221, 128
        $region36: #{tpu_custom_call.1} parent=27 // pred_fallthru
          _
        %s230 = sand.u32 %s49, 1
        %s231 = scalar_lea.sflag [#allocation3], %s230
        %s232 = sand.u32 %s49, 1
        %s233 = smul.addr %s232, 8
        %s234 = scalar_lea.vmem [#allocation2], %s233
        %p235 = pneg %p62
        %p236 = pneg %p59
        %s237 = sand.u32 %s77, 1
        %s238 = scalar_lea.sflag [#allocation6], %s237
        %s239 = sand.u32 %s77, 1
        %s240 = smul.addr %s239, 8
        %s241 = scalar_lea.vmem [#allocation5], %s240
        %p242 = pneg %p90
        %p243 = pneg %p87
        %p244 = pneg %p116
        %p245 = pneg %p113
        %s246 = sand.u32 %s103, 1
        %s247 = scalar_lea.sflag [#allocation4], %s246
        %s248 = sand.u32 %s103, 1
        %s249 = scalar_lea.vmem [#allocation7], %s248
        %p250 = pneg %p142
        %p251 = pneg %p139
        %s252 = sand.u32 %s129, 1
        %s253 = scalar_lea.sflag [#allocation9], %s252
        %s254 = sand.u32 %s129, 1
        %s255 = scalar_lea.vmem [#allocation8], %s254
        %v256 = vld [vmem:[%s214] sm:$0xff]
        %v257 = vld [vmem:[%s224] sm:$0xff]
        %v258 = vmul.f32 %v256, %v257
        %v259 = vsub.f32 0.5, %v258
        %v260 = vand.u32 2147483647, %v259
        %v261 = vrot.slane %v260, 4
        %v262 = vmax.f32 %v260, %v261
        %v263 = vrot.slane %v262, 2
        %v264 = vmax.f32 %v262, %v263
        %v265 = vrot.slane %v264, 1
        %v266 = vmax.f32 %v264, %v265
        %v267 = vlaneseq
        %v268 = vshrl.u32 %v267, 7
        %vm269 = vcmp.eq.f32.partialorder %v260, %v266
        %v270 = vsel %vm269, %v268, 8
        %v271 = vrot.slane %v270, 4
        %vm272 = vcmp.lt.s32.totalorder %v270, %v271
        %v273 = vsel %vm272, %v270, %v271
        %v274 = vrot.slane %v273, 2
        %vm275 = vcmp.lt.s32.totalorder %v273, %v274
        %v276 = vsel %vm275, %v273, %v274
        %v277 = vrot.slane %v276, 1
        %vm278 = vcmp.lt.s32.totalorder %v276, %v277
        %v279 = vsel %vm278, %v276, %v277
        %s280 = smul.u32 %s32, 8
        %v281 = vstv %s280
        %v282 = vadd.s32 %v279, %v281
        %p283 = scmp.eq.s32.totalorder %s32, 0
        // Predicated region
        $region37: #{tpu_custom_call.1} parent=27 // pred_check
          %p284 = pneg %p283
        $region38: #{tpu_custom_call.1} parent=27 // pred_check_branch
          %286 = sbr.rel (%p284) target = $region40
        $region39: #{tpu_custom_call.1} parent=27 // pred_region
          %287 = vst [vmem:[%s249] sm:$0x1] %v266
          %288 = vst [vmem:[%s255] sm:$0x1] %v282
        $region40: #{tpu_custom_call.1} parent=27 // pred_fallthru
          _
        %p289 = scmp.gt.s32.totalorder %s32, 0
        // Predicated region
        $region41: #{tpu_custom_call.1} parent=27 // pred_check
          %p290 = pneg %p289
        $region42: #{tpu_custom_call.1} parent=27 // pred_check_branch
          %292 = sbr.rel (%p290) target = $region44
        $region43: #{tpu_custom_call.1} parent=27 // pred_region
          %v293 = vld [vmem:[%s249] sm:$0x1]
          %vm294 = vcmp.gt.f32.partialorder %v266, %v293
          %v295 = vsel %vm294, %v266, %v293
          %296 = vst [vmem:[%s249] sm:$0x1] %v295
          %v297 = vld [vmem:[%s255] sm:$0x1]
          %v298 = vsel %vm294, %v282, %v297
          %299 = vst [vmem:[%s255] sm:$0x1] %v298
        $region44: #{tpu_custom_call.1} parent=27 // pred_fallthru
          _
        %p300 = scmp.eq.s32.totalorder %s32, 3
        // Predicated region
        $region45: #{tpu_custom_call.1} parent=27 // pred_check
          %p301 = pneg %p300
        $region46: #{tpu_custom_call.1} parent=27 // pred_check_branch
          %303 = sbr.rel (%p301) target = $region48
        $region47: #{tpu_custom_call.1} parent=27 // pred_region
          %v304 = vld [vmem:[%s249] sm:$0x1]
          %v305 = vmul.f32 %v304, 0.03125
          %306 = vst [vmem:[%s249] sm:$0x1] %v305
        $region48: #{tpu_custom_call.1} parent=27 // pred_fallthru
          _
        %s307 = sand.u32 %s103, 1
        %s308 = scalar_lea.sflag [#allocation4], %s307
        %s309 = sand.u32 %s103, 1
        %s310 = scalar_lea.vmem [#allocation7], %s309
        %s311 = sand.u32 %s129, 1
        %s312 = scalar_lea.sflag [#allocation9], %s311
        %s313 = sand.u32 %s129, 1
        %s314 = scalar_lea.vmem [#allocation8], %s313
        // Predicated region
        $region49: #{tpu_custom_call.1} parent=27 // pred_check
          %p315 = pneg %p113
        $region50: #{tpu_custom_call.1} parent=27 // pred_check_branch
          %317 = sbr.rel (%p315) target = $region52
        $region51: #{tpu_custom_call.1} parent=27 // pred_region
          %319 = vsyncadd %s308, 0
          %s320 = scalar_lea.hbm %s2, %s31
          %s322 = sshll.u32 %s310, 4
          %s323 = int_to_ptr.vmem [resolvable:$true] %s322
          %s324 = sshll.u32 %s320, 4
          %s325 = int_to_ptr.hbm [resolvable:$true] %s324
          %327 = dma.vmem_to_hbm [thread:$0]  %s323, 16, %s325, %s308
        $region52: #{tpu_custom_call.1} parent=27 // pred_fallthru
          _
        // Predicated region
        $region53: #{tpu_custom_call.1} parent=27 // pred_check
          %p328 = pneg %p139
        $region54: #{tpu_custom_call.1} parent=27 // pred_check_branch
          %330 = sbr.rel (%p328) target = $region56
        $region55: #{tpu_custom_call.1} parent=27 // pred_region
          %332 = vsyncadd %s312, 0
          %s333 = scalar_lea.hbm %s3, %s31
          %s335 = sshll.u32 %s314, 4
          %s336 = int_to_ptr.vmem [resolvable:$true] %s335
          %s337 = sshll.u32 %s333, 4
          %s338 = int_to_ptr.hbm [resolvable:$true] %s337
          %340 = dma.vmem_to_hbm [thread:$0]  %s336, 16, %s338, %s312
        $region56: #{tpu_custom_call.1} parent=27 // pred_fallthru
          _
      $region28: #{tpu_custom_call.1} parent=5 // pred_fallthru
        _
      %p341 = scmp.le.s32.totalorder 2, %s22
      // Predicated region
      $region57: #{tpu_custom_call.1} parent=5 // pred_check
        %p342 = pneg %p341
      $region58: #{tpu_custom_call.1} parent=5 // pred_check_branch
        %344 = sbr.rel (%p342) target = $region60
      $region59: #{tpu_custom_call.1} parent=5 // pred_region
        %s345 = ssub.s32 %s22, 2
        // Predicated region
        $region61: #{tpu_custom_call.1} parent=59 // pred_check
          %p346 = pneg %p119
        $region62: #{tpu_custom_call.1} parent=59 // pred_check_branch
          %348 = sbr.rel (%p346) target = $region64
        $region63: #{tpu_custom_call.1} parent=59 // pred_region
          %s349 = sand.u32 %s104, 1
          %s350 = scalar_lea.sflag [#allocation4], %s349
          %s351 = sand.u32 %s104, 1
          %s352 = scalar_lea.vmem [#allocation7], %s351
          %354 = dma.done %s350, 16
        $region64: #{tpu_custom_call.1} parent=59 // pred_fallthru
          _
        // Predicated region
        $region65: #{tpu_custom_call.1} parent=59 // pred_check
          %p355 = pneg %p145
        $region66: #{tpu_custom_call.1} parent=59 // pred_check_branch
          %357 = sbr.rel (%p355) target = $region68
        $region67: #{tpu_custom_call.1} parent=59 // pred_region
          %s358 = sand.u32 %s130, 1
          %s359 = scalar_lea.sflag [#allocation9], %s358
          %s360 = sand.u32 %s130, 1
          %s361 = scalar_lea.vmem [#allocation8], %s360
          %363 = dma.done %s359, 16
        $region68: #{tpu_custom_call.1} parent=59 // pred_fallthru
          _
      $region60: #{tpu_custom_call.1} parent=5 // pred_fallthru
        _
    $region6: #{tpu_custom_call.1} parent=1 // loop_footer
      %s26 = sadd.s32 1, %s22
    $region7: #{tpu_custom_call.1} parent=1 // loop_footer_branch
      %21 = sbr.rel target = $region3
    $region8: #{tpu_custom_call.1} parent=1 // loop_exit
      _
    %364 = vsyncpa [#allocation3], 1
    %s365 = scalar_lea.sflag [#allocation3], 1
    %366 = vsyncpa %s365, 1
    %367 = vsyncpa [#allocation6], 1
    %s368 = scalar_lea.sflag [#allocation6], 1
    %369 = vsyncpa %s368, 1
    %370 = vsyncpa [#allocation4], 1
    %s371 = scalar_lea.sflag [#allocation4], 1
    %372 = vsyncpa %s371, 1
    %373 = vsyncpa [#allocation9], 1
    %s374 = scalar_lea.sflag [#allocation9], 1
    %375 = vsyncpa %s374, 1

</llo_original>
